<compile_context>
chip_gen: v5e
topology: v5e:2x2
jax: 0.10.0
libtpu: 0.0.40
codegen_flags: <defaults>
</compile_context>

<pallas_src>
import functools
import jax
import jax.numpy as jnp
from jax.experimental import pallas as pl
from jax.experimental.pallas import tpu as pltpu

EPS = 1e-5  # nn.LayerNorm default eps


def _layernorm_1pass(x, gamma, beta):
    """Single-pass LayerNorm: var = E[x^2] - mu^2 (one sum + one sum-of-squares)."""
    inv_n = 1.0 / x.shape[-1]
    s = jnp.sum(x, axis=-1, keepdims=True)
    sq = jnp.sum(x * x, axis=-1, keepdims=True)
    mu = s * inv_n
    var = sq * inv_n - mu * mu
    return (x - mu) * jax.lax.rsqrt(var + EPS) * gamma + beta


def block_kernel(x_ref, g0_ref, b0_ref, wp_ref, bp_ref, g1_ref, b1_ref,
                 wqkv_ref, out_ref, *, num_heads):
    bt, n, dim = x_ref.shape
    dim_r = wp_ref.shape[1]
    head_dim = dim_r // num_heads

    # Flatten the batch tile into the matmul M dimension (leading-dim merge
    # only; lane dim untouched, N is full-extent and a multiple of 8).
    x2 = x_ref[...].reshape(bt * n, dim)

    # norm0
    y = _layernorm_1pass(x2, g0_ref[...], b0_ref[...])

    # proj_reduction (1x1 conv == per-token linear, with bias)
    h2 = jnp.dot(y, wp_ref[...], preferred_element_type=jnp.float32) + bp_ref[...]

    # norm1
    z = _layernorm_1pass(h2, g1_ref[...], b1_ref[...])

    # fused q|k|v projection (no bias); attention scale pre-folded into the
    # q columns of wqkv by the wrapper.
    qkv = jnp.dot(z, wqkv_ref[...], preferred_element_type=jnp.float32)

    # Multi-head attention, batched over the batch tile via 3-D einsums.
    o_heads = []
    for hd in range(num_heads):
        lo = hd * head_dim
        qh = qkv[:, lo:lo + head_dim].reshape(bt, n, head_dim)
        kh = qkv[:, dim_r + lo:dim_r + lo + head_dim].reshape(bt, n, head_dim)
        vh = qkv[:, 2 * dim_r + lo:2 * dim_r + lo + head_dim].reshape(bt, n, head_dim)

        s = jnp.einsum("bqd,bkd->bqk", qh, kh,
                       preferred_element_type=jnp.float32)       # (bt, N, N)
        s = s - jnp.max(s, axis=-1, keepdims=True)
        e = jnp.exp(s)
        p = e * pl.reciprocal(jnp.sum(e, axis=-1, keepdims=True), approx=True)
        o_heads.append(jnp.einsum("bqk,bkd->bqd", p, vh,
                                  preferred_element_type=jnp.float32))

    o = jnp.concatenate(o_heads, axis=-1)                        # (bt, N, dim_r)
    # Residual + single lane-dense store of the full output tile.
    out_ref[...] = (h2.reshape(bt, n, dim_r) + o).astype(out_ref.dtype)


def block_forward(x, params, *, num_heads, block_b=1):
    """x: (B, N, dim) float32 -> (B, N, dim // channel_reduction)."""
    B, N, dim = x.shape
    dim_r = params["wp"].shape[1]
    head_dim = dim_r // num_heads
    scale = head_dim ** (-0.5)
    assert B % block_b == 0, "block_b must divide B"

    # Fuse q|k|v into one (dim_r, 3*dim_r) weight and fold the attention scale
    # into the q columns (free parameter transform, done once outside the kernel).
    wqkv = jnp.concatenate(
        [params["wq"] * jnp.float32(scale), params["wk"], params["wv"]], axis=1)

    kern = functools.partial(block_kernel, num_heads=num_heads)

    vec = lambda d: pl.BlockSpec((1, d), lambda b: (0, 0))
    mat = lambda r, c: pl.BlockSpec((r, c), lambda b: (0, 0))

    return pl.pallas_call(
        kern,
        out_shape=jax.ShapeDtypeStruct((B, N, dim_r), jnp.float32),
        grid_spec=pltpu.PrefetchScalarGridSpec(
            num_scalar_prefetch=0,
            grid=(B // block_b,),
            in_specs=[
                pl.BlockSpec((block_b, N, dim), lambda b: (b, 0, 0)),  # x
                vec(dim),               # gamma0
                vec(dim),               # beta0
                mat(dim, dim_r),        # Wp
                vec(dim_r),             # bp
                vec(dim_r),             # gamma1
                vec(dim_r),             # beta1
                mat(dim_r, 3 * dim_r),  # Wq|Wk|Wv fused (scale folded into Wq)
            ],
            out_specs=pl.BlockSpec((block_b, N, dim_r), lambda b: (b, 0, 0)),
        ),
        compiler_params=pltpu.CompilerParams(
            dimension_semantics=("parallel",),
            vmem_limit_bytes=32 * 1024 * 1024,
        ),
    )(x, params["g0"], params["b0"], params["wp"], params["bp"],
      params["g1"], params["b1"], wqkv)


def reference_forward(x, params, *, num_heads):
    """Pure-JAX reference matching the PyTorch Block.forward (unfused params)."""
    def ln(t, g, b):
        mu = jnp.mean(t, -1, keepdims=True)
        var = jnp.mean((t - mu) ** 2, -1, keepdims=True)
        return (t - mu) / jnp.sqrt(var + EPS) * g + b

    B, N, _ = x.shape
    dim_r = params["wp"].shape[1]
    hd = dim_r // num_heads
    scale = hd ** (-0.5)

    y = ln(x, params["g0"][0], params["b0"][0])
    h = y @ params["wp"] + params["bp"][0]
    z = ln(h, params["g1"][0], params["b1"][0])
    q = (z @ params["wq"]).reshape(B, N, num_heads, hd).transpose(0, 2, 1, 3)
    k = (z @ params["wk"]).reshape(B, N, num_heads, hd).transpose(0, 2, 1, 3)
    v = (z @ params["wv"]).reshape(B, N, num_heads, hd).transpose(0, 2, 1, 3)
    attn = jax.nn.softmax(jnp.einsum("bhqd,bhkd->bhqk", q, k) * scale, axis=-1)
    o = jnp.einsum("bhqk,bhkd->bhqd", attn, v).transpose(0, 2, 1, 3).reshape(B, N, dim_r)
    return h + o


if __name__ == "__main__":
    # Small shapes consistent with the module: dim=32, channel_reduction=2,
    # num_heads=2 -> dim_r=16, head_dim=8.
    B, N, dim = 2, 8, 32
    channel_reduction, num_heads = 2, 2
    dim_r = dim // channel_reduction

    key = jax.random.PRNGKey(0)
    ks = jax.random.split(key, 8)
    x = jax.random.normal(ks[0], (B, N, dim), dtype=jnp.float32)

    # Deterministic synthetic parameters (conv weights pre-reshaped to (in, out)).
    params = {
        "g0": jnp.ones((1, dim), jnp.float32),
        "b0": jnp.zeros((1, dim), jnp.float32),
        "wp": 0.1 * jax.random.normal(ks[1], (dim, dim_r), jnp.float32),
        "bp": 0.05 * jax.random.normal(ks[2], (1, dim_r), jnp.float32),
        "g1": jnp.ones((1, dim_r), jnp.float32),
        "b1": jnp.zeros((1, dim_r), jnp.float32),
        "wq": 0.1 * jax.random.normal(ks[3], (dim_r, dim_r), jnp.float32),
        "wk": 0.1 * jax.random.normal(ks[4], (dim_r, dim_r), jnp.float32),
        "wv": 0.1 * jax.random.normal(ks[5], (dim_r, dim_r), jnp.float32),
    }

    out = block_forward(x, params, num_heads=num_heads, block_b=1)
    out = jax.block_until_ready(out)

    ref = reference_forward(x, params, num_heads=num_heads)
    assert out.shape == (B, N, dim_r)
    # tolerance accounts for pl.reciprocal(approx=True) in the softmax denom
    assert jnp.allclose(out, ref, atol=1e-3, rtol=1e-3), \
        f"max abs err {jnp.max(jnp.abs(out - ref))}"
    print("KERNEL_OK")
</pallas_src>

<mosaic_0001>
module attributes {stable_mosaic.version = 11 : i64} {
  func.func @block_kernel(%arg0: i32, %arg1: memref<1x8x32xf32, #tpu.memory_space<vmem>>, %arg2: memref<1x32xf32, #tpu.memory_space<vmem>>, %arg3: memref<1x32xf32, #tpu.memory_space<vmem>>, %arg4: memref<32x16xf32, #tpu.memory_space<vmem>>, %arg5: memref<1x16xf32, #tpu.memory_space<vmem>>, %arg6: memref<1x16xf32, #tpu.memory_space<vmem>>, %arg7: memref<1x16xf32, #tpu.memory_space<vmem>>, %arg8: memref<16x48xf32, #tpu.memory_space<vmem>>, %arg9: memref<1x8x16xf32, #tpu.memory_space<vmem>>) attributes {dimension_semantics = [#tpu.dimension_semantics<parallel>], iteration_bounds = array<i64: 2>, scalar_prefetch = 0 : i64, scratch_operands = 0 : i64, tpu.core_type = #tpu.core_type<tc>, window_params = [{transform_indices = @transform_0, window_bounds = array<i64: 1, 8, 32>}, {pipeline_mode = #tpu.pipeline_mode<synchronous>, transform_indices = @transform_1, window_bounds = array<i64: 1, 32>}, {pipeline_mode = #tpu.pipeline_mode<synchronous>, transform_indices = @transform_2, window_bounds = array<i64: 1, 32>}, {pipeline_mode = #tpu.pipeline_mode<synchronous>, transform_indices = @transform_3, window_bounds = array<i64: 32, 16>}, {pipeline_mode = #tpu.pipeline_mode<synchronous>, transform_indices = @transform_4, window_bounds = array<i64: 1, 16>}, {pipeline_mode = #tpu.pipeline_mode<synchronous>, transform_indices = @transform_5, window_bounds = array<i64: 1, 16>}, {pipeline_mode = #tpu.pipeline_mode<synchronous>, transform_indices = @transform_6, window_bounds = array<i64: 1, 16>}, {pipeline_mode = #tpu.pipeline_mode<synchronous>, transform_indices = @transform_7, window_bounds = array<i64: 16, 48>}, {transform_indices = @transform_8, window_bounds = array<i64: 1, 8, 16>}]} {
    %c0 = arith.constant 0 : index
    %c0_0 = arith.constant 0 : index
    %c0_1 = arith.constant 0 : index
    %0 = vector.load %arg1[%c0, %c0_0, %c0_1] : memref<1x8x32xf32, #tpu.memory_space<vmem>>, vector<1x8x32xf32>
    %1 = vector.shape_cast %0 : vector<1x8x32xf32> to vector<8x32xf32>
    %c0_2 = arith.constant 0 : index
    %c0_3 = arith.constant 0 : index
    %2 = vector.load %arg2[%c0_2, %c0_3] : memref<1x32xf32, #tpu.memory_space<vmem>>, vector<1x32xf32>
    %c0_4 = arith.constant 0 : index
    %c0_5 = arith.constant 0 : index
    %3 = vector.load %arg3[%c0_4, %c0_5] : memref<1x32xf32, #tpu.memory_space<vmem>>, vector<1x32xf32>
    %cst = arith.constant dense<0.000000e+00> : vector<8xf32>
    %4 = vector.multi_reduction <add>, %1, %cst [1] : vector<8x32xf32> to vector<8xf32>
    %5 = vector.shape_cast %4 : vector<8xf32> to vector<8x1xf32>
    %6 = arith.mulf %1, %1 : vector<8x32xf32>
    %cst_6 = arith.constant dense<0.000000e+00> : vector<8xf32>
    %7 = vector.multi_reduction <add>, %6, %cst_6 [1] : vector<8x32xf32> to vector<8xf32>
    %8 = vector.shape_cast %7 : vector<8xf32> to vector<8x1xf32>
    %cst_7 = arith.constant 3.125000e-02 : f32
    %9 = vector.broadcast %cst_7 : f32 to vector<8x1xf32>
    %10 = arith.mulf %5, %9 : vector<8x1xf32>
    %cst_8 = arith.constant 3.125000e-02 : f32
    %11 = vector.broadcast %cst_8 : f32 to vector<8x1xf32>
    %12 = arith.mulf %8, %11 : vector<8x1xf32>
    %13 = arith.mulf %10, %10 : vector<8x1xf32>
    %14 = arith.subf %12, %13 : vector<8x1xf32>
    %15 = vector.broadcast %10 : vector<8x1xf32> to vector<8x32xf32>
    %16 = arith.subf %1, %15 : vector<8x32xf32>
    %cst_9 = arith.constant 9.99999974E-6 : f32
    %17 = vector.broadcast %cst_9 : f32 to vector<8x1xf32>
    %18 = arith.addf %14, %17 : vector<8x1xf32>
    %19 = math.rsqrt %18 : vector<8x1xf32>
    %20 = vector.broadcast %19 : vector<8x1xf32> to vector<8x32xf32>
    %21 = arith.mulf %16, %20 : vector<8x32xf32>
    %22 = vector.broadcast %2 : vector<1x32xf32> to vector<8x32xf32>
    %23 = arith.mulf %21, %22 : vector<8x32xf32>
    %24 = vector.broadcast %3 : vector<1x32xf32> to vector<8x32xf32>
    %25 = arith.addf %23, %24 : vector<8x32xf32>
    %c0_10 = arith.constant 0 : index
    %c0_11 = arith.constant 0 : index
    %26 = vector.load %arg4[%c0_10, %c0_11] : memref<32x16xf32, #tpu.memory_space<vmem>>, vector<32x16xf32>
    %cst_12 = arith.constant dense<0.000000e+00> : vector<8x16xf32>
    %27 = tpu.matmul %25, %26, %cst_12 {dimension_numbers = #tpu.dot_dimension_numbers<[1], [0], [0], [1], [0, 0, 1, 1], [], []>} : vector<8x32xf32>, vector<32x16xf32>, vector<8x16xf32> -> vector<8x16xf32>
    %c0_13 = arith.constant 0 : index
    %c0_14 = arith.constant 0 : index
    %28 = vector.load %arg5[%c0_13, %c0_14] : memref<1x16xf32, #tpu.memory_space<vmem>>, vector<1x16xf32>
    %29 = vector.broadcast %28 : vector<1x16xf32> to vector<8x16xf32>
    %30 = arith.addf %27, %29 : vector<8x16xf32>
    %c0_15 = arith.constant 0 : index
    %c0_16 = arith.constant 0 : index
    %31 = vector.load %arg6[%c0_15, %c0_16] : memref<1x16xf32, #tpu.memory_space<vmem>>, vector<1x16xf32>
    %c0_17 = arith.constant 0 : index
    %c0_18 = arith.constant 0 : index
    %32 = vector.load %arg7[%c0_17, %c0_18] : memref<1x16xf32, #tpu.memory_space<vmem>>, vector<1x16xf32>
    %cst_19 = arith.constant dense<0.000000e+00> : vector<8xf32>
    %33 = vector.multi_reduction <add>, %30, %cst_19 [1] : vector<8x16xf32> to vector<8xf32>
    %34 = vector.shape_cast %33 : vector<8xf32> to vector<8x1xf32>
    %35 = arith.mulf %30, %30 : vector<8x16xf32>
    %cst_20 = arith.constant dense<0.000000e+00> : vector<8xf32>
    %36 = vector.multi_reduction <add>, %35, %cst_20 [1] : vector<8x16xf32> to vector<8xf32>
    %37 = vector.shape_cast %36 : vector<8xf32> to vector<8x1xf32>
    %cst_21 = arith.constant 6.250000e-02 : f32
    %38 = vector.broadcast %cst_21 : f32 to vector<8x1xf32>
    %39 = arith.mulf %34, %38 : vector<8x1xf32>
    %cst_22 = arith.constant 6.250000e-02 : f32
    %40 = vector.broadcast %cst_22 : f32 to vector<8x1xf32>
    %41 = arith.mulf %37, %40 : vector<8x1xf32>
    %42 = arith.mulf %39, %39 : vector<8x1xf32>
    %43 = arith.subf %41, %42 : vector<8x1xf32>
    %44 = vector.broadcast %39 : vector<8x1xf32> to vector<8x16xf32>
    %45 = arith.subf %30, %44 : vector<8x16xf32>
    %cst_23 = arith.constant 9.99999974E-6 : f32
    %46 = vector.broadcast %cst_23 : f32 to vector<8x1xf32>
    %47 = arith.addf %43, %46 : vector<8x1xf32>
    %48 = math.rsqrt %47 : vector<8x1xf32>
    %49 = vector.broadcast %48 : vector<8x1xf32> to vector<8x16xf32>
    %50 = arith.mulf %45, %49 : vector<8x16xf32>
    %51 = vector.broadcast %31 : vector<1x16xf32> to vector<8x16xf32>
    %52 = arith.mulf %50, %51 : vector<8x16xf32>
    %53 = vector.broadcast %32 : vector<1x16xf32> to vector<8x16xf32>
    %54 = arith.addf %52, %53 : vector<8x16xf32>
    %c0_24 = arith.constant 0 : index
    %c0_25 = arith.constant 0 : index
    %55 = vector.load %arg8[%c0_24, %c0_25] : memref<16x48xf32, #tpu.memory_space<vmem>>, vector<16x48xf32>
    %cst_26 = arith.constant dense<0.000000e+00> : vector<8x48xf32>
    %56 = tpu.matmul %54, %55, %cst_26 {dimension_numbers = #tpu.dot_dimension_numbers<[1], [0], [0], [1], [0, 0, 1, 1], [], []>} : vector<8x16xf32>, vector<16x48xf32>, vector<8x48xf32> -> vector<8x48xf32>
    %57 = vector.extract_strided_slice %56 {offsets = [0, 0], sizes = [8, 8], strides = [1, 1]} : vector<8x48xf32> to vector<8x8xf32>
    %58 = vector.shape_cast %57 : vector<8x8xf32> to vector<1x8x8xf32>
    %59 = vector.extract_strided_slice %56 {offsets = [0, 16], sizes = [8, 8], strides = [1, 1]} : vector<8x48xf32> to vector<8x8xf32>
    %60 = vector.shape_cast %59 : vector<8x8xf32> to vector<1x8x8xf32>
    %61 = vector.extract_strided_slice %56 {offsets = [0, 32], sizes = [8, 8], strides = [1, 1]} : vector<8x48xf32> to vector<8x8xf32>
    %62 = vector.shape_cast %61 : vector<8x8xf32> to vector<1x8x8xf32>
    "tpu.trace_start"() <{level = 10 : i32, message = "bqd,bkd->bqk"}> : () -> ()
    %cst_27 = arith.constant dense<0.000000e+00> : vector<1x8x8xf32>
    %63 = tpu.matmul %58, %60, %cst_27 {dimension_numbers = #tpu.dot_dimension_numbers<[2], [2], [1], [1], [0, 0, 0, 1, 1, 1], [0], [0]>} : vector<1x8x8xf32>, vector<1x8x8xf32>, vector<1x8x8xf32> -> vector<1x8x8xf32>
    "tpu.trace_stop"() : () -> ()
    %cst_28 = arith.constant dense<0xFF800000> : vector<1x8xf32>
    %64 = vector.multi_reduction <maximumf>, %63, %cst_28 [2] : vector<1x8x8xf32> to vector<1x8xf32>
    %65 = vector.shape_cast %64 : vector<1x8xf32> to vector<1x8x1xf32>
    %66 = vector.broadcast %65 : vector<1x8x1xf32> to vector<1x8x8xf32>
    %67 = arith.subf %63, %66 : vector<1x8x8xf32>
    %68 = math.exp %67 : vector<1x8x8xf32>
    %cst_29 = arith.constant dense<0.000000e+00> : vector<1x8xf32>
    %69 = vector.multi_reduction <add>, %68, %cst_29 [2] : vector<1x8x8xf32> to vector<1x8xf32>
    %70 = vector.shape_cast %69 : vector<1x8xf32> to vector<1x8x1xf32>
    %71 = tpu.reciprocal %70 {approx = true} : vector<1x8x1xf32> -> vector<1x8x1xf32>
    %72 = vector.broadcast %71 : vector<1x8x1xf32> to vector<1x8x8xf32>
    %73 = arith.mulf %68, %72 : vector<1x8x8xf32>
    "tpu.trace_start"() <{level = 10 : i32, message = "bqk,bkd->bqd"}> : () -> ()
    %cst_30 = arith.constant dense<0.000000e+00> : vector<1x8x8xf32>
    %74 = tpu.matmul %73, %62, %cst_30 {dimension_numbers = #tpu.dot_dimension_numbers<[2], [1], [1], [2], [0, 0, 0, 1, 1, 2], [0], [0]>} : vector<1x8x8xf32>, vector<1x8x8xf32>, vector<1x8x8xf32> -> vector<1x8x8xf32>
    "tpu.trace_stop"() : () -> ()
    %75 = vector.extract_strided_slice %56 {offsets = [0, 8], sizes = [8, 8], strides = [1, 1]} : vector<8x48xf32> to vector<8x8xf32>
    %76 = vector.shape_cast %75 : vector<8x8xf32> to vector<1x8x8xf32>
    %77 = vector.extract_strided_slice %56 {offsets = [0, 24], sizes = [8, 8], strides = [1, 1]} : vector<8x48xf32> to vector<8x8xf32>
    %78 = vector.shape_cast %77 : vector<8x8xf32> to vector<1x8x8xf32>
    %79 = vector.extract_strided_slice %56 {offsets = [0, 40], sizes = [8, 8], strides = [1, 1]} : vector<8x48xf32> to vector<8x8xf32>
    %80 = vector.shape_cast %79 : vector<8x8xf32> to vector<1x8x8xf32>
    "tpu.trace_start"() <{level = 10 : i32, message = "bqd,bkd->bqk"}> : () -> ()
    %cst_31 = arith.constant dense<0.000000e+00> : vector<1x8x8xf32>
    %81 = tpu.matmul %76, %78, %cst_31 {dimension_numbers = #tpu.dot_dimension_numbers<[2], [2], [1], [1], [0, 0, 0, 1, 1, 1], [0], [0]>} : vector<1x8x8xf32>, vector<1x8x8xf32>, vector<1x8x8xf32> -> vector<1x8x8xf32>
    "tpu.trace_stop"() : () -> ()
    %cst_32 = arith.constant dense<0xFF800000> : vector<1x8xf32>
    %82 = vector.multi_reduction <maximumf>, %81, %cst_32 [2] : vector<1x8x8xf32> to vector<1x8xf32>
    %83 = vector.shape_cast %82 : vector<1x8xf32> to vector<1x8x1xf32>
    %84 = vector.broadcast %83 : vector<1x8x1xf32> to vector<1x8x8xf32>
    %85 = arith.subf %81, %84 : vector<1x8x8xf32>
    %86 = math.exp %85 : vector<1x8x8xf32>
    %cst_33 = arith.constant dense<0.000000e+00> : vector<1x8xf32>
    %87 = vector.multi_reduction <add>, %86, %cst_33 [2] : vector<1x8x8xf32> to vector<1x8xf32>
    %88 = vector.shape_cast %87 : vector<1x8xf32> to vector<1x8x1xf32>
    %89 = tpu.reciprocal %88 {approx = true} : vector<1x8x1xf32> -> vector<1x8x1xf32>
    %90 = vector.broadcast %89 : vector<1x8x1xf32> to vector<1x8x8xf32>
    %91 = arith.mulf %86, %90 : vector<1x8x8xf32>
    "tpu.trace_start"() <{level = 10 : i32, message = "bqk,bkd->bqd"}> : () -> ()
    %cst_34 = arith.constant dense<0.000000e+00> : vector<1x8x8xf32>
    %92 = tpu.matmul %91, %80, %cst_34 {dimension_numbers = #tpu.dot_dimension_numbers<[2], [1], [1], [2], [0, 0, 0, 1, 1, 2], [0], [0]>} : vector<1x8x8xf32>, vector<1x8x8xf32>, vector<1x8x8xf32> -> vector<1x8x8xf32>
    "tpu.trace_stop"() : () -> ()
    %93 = tpu.concatenate %74, %92 in 2 : vector<1x8x8xf32>, vector<1x8x8xf32> -> vector<1x8x16xf32>
    %94 = vector.shape_cast %30 : vector<8x16xf32> to vector<1x8x16xf32>
    %95 = arith.addf %94, %93 : vector<1x8x16xf32>
    %c0_35 = arith.constant 0 : index
    %c0_36 = arith.constant 0 : index
    %c0_37 = arith.constant 0 : index
    %96 = vector.load %arg9[%c0_35, %c0_36, %c0_37] : memref<1x8x16xf32, #tpu.memory_space<vmem>>, vector<1x8x16xf32>
    tpu.vector_store %arg9[%c0_35, %c0_36, %c0_37], %95 {strides = array<i32>} : memref<1x8x16xf32, #tpu.memory_space<vmem>>, vector<1x8x16xf32>,
    return
  }
  func.func @transform_0(%arg0: i32) -> (i32, i32, i32) {
    %c0_i32 = arith.constant 0 : i32
    %c0_i32_0 = arith.constant 0 : i32
    %c0_i32_1 = arith.constant 0 : i32
    return %arg0, %c0_i32, %c0_i32_0 : i32, i32, i32
  }
  func.func @transform_1(%arg0: i32) -> (i32, i32) {
    %c0_i32 = arith.constant 0 : i32
    %c0_i32_0 = arith.constant 0 : i32
    %c0_i32_1 = arith.constant 0 : i32
    return %c0_i32, %c0_i32_0 : i32, i32
  }
  func.func @transform_2(%arg0: i32) -> (i32, i32) {
    %c0_i32 = arith.constant 0 : i32
    %c0_i32_0 = arith.constant 0 : i32
    %c0_i32_1 = arith.constant 0 : i32
    return %c0_i32, %c0_i32_0 : i32, i32
  }
  func.func @transform_3(%arg0: i32) -> (i32, i32) {
    %c0_i32 = arith.constant 0 : i32
    %c0_i32_0 = arith.constant 0 : i32
    %c0_i32_1 = arith.constant 0 : i32
    return %c0_i32, %c0_i32_0 : i32, i32
  }
  func.func @transform_4(%arg0: i32) -> (i32, i32) {
    %c0_i32 = arith.constant 0 : i32
    %c0_i32_0 = arith.constant 0 : i32
    %c0_i32_1 = arith.constant 0 : i32
    return %c0_i32, %c0_i32_0 : i32, i32
  }
  func.func @transform_5(%arg0: i32) -> (i32, i32) {
    %c0_i32 = arith.constant 0 : i32
    %c0_i32_0 = arith.constant 0 : i32
    %c0_i32_1 = arith.constant 0 : i32
    return %c0_i32, %c0_i32_0 : i32, i32
  }
  func.func @transform_6(%arg0: i32) -> (i32, i32) {
    %c0_i32 = arith.constant 0 : i32
    %c0_i32_0 = arith.constant 0 : i32
    %c0_i32_1 = arith.constant 0 : i32
    return %c0_i32, %c0_i32_0 : i32, i32
  }
  func.func @transform_7(%arg0: i32) -> (i32, i32) {
    %c0_i32 = arith.constant 0 : i32
    %c0_i32_0 = arith.constant 0 : i32
    %c0_i32_1 = arith.constant 0 : i32
    return %c0_i32, %c0_i32_0 : i32, i32
  }
  func.func @transform_8(%arg0: i32) -> (i32, i32, i32) {
    %c0_i32 = arith.constant 0 : i32
    %c0_i32_0 = arith.constant 0 : i32
    %c0_i32_1 = arith.constant 0 : i32
    return %arg0, %c0_i32, %c0_i32_0 : i32, i32, i32
  }
}

</mosaic_0001>

<llo_original>
// kernel: tpu_custom_call.1
$region0: #{tpu_custom_call.1}
  #allocation0 [shape = 'u32[]', space=smem, size = 0x4, offset = 0x4, fixed_abs, tag = 'smem constant byte address 0x4 - core index']
  #allocation1 [shape = 'u32[72,128]{1,0:T(1,128)}', space=vmem, size = 0x9000, scoped, tag = 'internal scratch']
  %s0 = inlined_call_operand.vmem [shape: f32[2,8,32], index: 0, kind: input, shape index: {}]
  %s1 = inlined_call_operand.vmem [shape: f32[1,32], index: 1, kind: input, shape index: {}]
  %s2 = inlined_call_operand.vmem [shape: f32[1,32], index: 2, kind: input, shape index: {}]
  %s3 = inlined_call_operand.vmem [shape: f32[32,16], index: 3, kind: input, shape index: {}]
  %s4 = inlined_call_operand.vmem [shape: f32[1,16], index: 4, kind: input, shape index: {}]
  %s5 = inlined_call_operand.vmem [shape: f32[1,16], index: 5, kind: input, shape index: {}]
  %s6 = inlined_call_operand.vmem [shape: f32[1,16], index: 6, kind: input, shape index: {}]
  %s7 = inlined_call_operand.vmem [shape: f32[16,48], index: 7, kind: input, shape index: {}]
  %s8 = inlined_call_operand.hbm [shape: f32[2,8,16], index: 8, kind: output, shape index: {}]
  %s9 = sld [smem:[#allocation0]]
  $region65: #{tpu_custom_call.1} parent=0
    _
  %s11 = ssub.s32 1, %s9
  %s12 = scalar_select 0, %s11, %s9
  $region1: #{tpu_custom_call.1} parent=0
    #allocation2 [shape = 'u8[8192]{0}', space=vmem, size = 0x2000, scoped, tag = 'output window, operand 0']
    #allocation3 [shape = 's32[2]{0}', space=sflag, size = 0x8, scoped, tag = 'scoped memory for tpu_custom_call.1']
    %13 = vsyncpa [#allocation3], 0
    %s14 = scalar_lea.sflag [#allocation3], 1
    %15 = vsyncpa %s14, 0
    loop: start=0, step=1, limit=4
    $region2: #{tpu_custom_call.1} parent=1 // loop_pre_header
      _
    $region3: #{tpu_custom_call.1} parent=1 // loop_header
      %s17 = sphi 0, %s21
      %p18 = scmp.ge.s32.totalorder %s17, 4
      %s27 = sphi 0, %s29
      %s30 = sphi 0, %s27
      %s31 = sphi 0, %s30
      %s47 = sphi 0, %s31
      %s51 = sphi 0, %s51
      %s53 = sphi 0, %s51
      %s54 = sphi 0, %s53
      %s68 = sphi 0, %s54
      %s72 = sphi 0, %s72
      %s74 = sphi 0, %s72
      %s75 = sphi 0, %s74
      %s89 = sphi 0, %s75
      %s93 = sphi 0, %s93
      %s95 = sphi 0, %s93
      %s96 = sphi 0, %s95
      %s110 = sphi 0, %s96
      %s114 = sphi 0, %s114
      %s116 = sphi 0, %s114
      %s117 = sphi 0, %s116
      %s131 = sphi 0, %s117
      %s135 = sphi 0, %s135
      %s137 = sphi 0, %s135
      %s138 = sphi 0, %s137
      %s152 = sphi 0, %s138
      %s156 = sphi 0, %s156
      %s158 = sphi 0, %s156
      %s159 = sphi 0, %s158
      %s173 = sphi 0, %s159
      %s177 = sphi 0, %s177
      %s179 = sphi 0, %s177
      %s180 = sphi 0, %s179
      %s194 = sphi 0, %s180
      %s200 = sphi 0, %s202
      %s203 = sphi 0, %s200
      %s204 = sphi 0, %s203
      %s220 = sphi 0, %s204
    $region4: #{tpu_custom_call.1} parent=1 // loop_header_branch
      %20 = sbr.rel (%p18) target = $region8
    $region5: #{tpu_custom_call.1} parent=1 // loop_body
      %s22 = ssub.s32 %s17, 1
      %s23 = ssub.s32 %s17, 2
      %s24 = sadd.s32 %s17, 1
      %s25 = ssub.s32 %s17, %s24
      %p26 = scmp.eq.s32.totalorder %s25, 0
      %s28 = sadd.s32 %s27, 1
      %s29 = scalar_select %p26, %s27, %s28
      %p32 = pneg %p26
      %p33 = scmp.eq.s32.totalorder %s17, 1
      %p34 = por %p32, %p33
      %p35 = scmp.ne.s32.totalorder %s27, %s30
      %p36 = scmp.eq.s32.totalorder %s17, 0
      %p37 = por %p35, %p36
      %p38 = scmp.ne.s32.totalorder %s27, %s30
      %p39 = scmp.eq.s32.totalorder %s22, 1
      %p40 = por %p38, %p39
      %p41 = scmp.ne.s32.totalorder %s30, %s31
      %p42 = scmp.eq.s32.totalorder %s22, 0
      %p43 = por %p41, %p42
      %p44 = scmp.ne.s32.totalorder %s30, %s31
      %p45 = scmp.eq.s32.totalorder %s23, 1
      %p46 = por %p44, %p45
      %p48 = scmp.ne.s32.totalorder %s31, %s47
      %p49 = scmp.eq.s32.totalorder %s23, 0
      %p50 = por %p48, %p49
      %s52 = sadd.s32 %s51, 1
      %p55 = scmp.eq.s32.totalorder %s17, 1
      %p56 = scmp.ne.s32.totalorder %s51, %s53
      %p57 = scmp.eq.s32.totalorder %s17, 0
      %p58 = por %p56, %p57
      %p59 = scmp.ne.s32.totalorder %s51, %s53
      %p60 = scmp.eq.s32.totalorder %s22, 1
      %p61 = por %p59, %p60
      %p62 = scmp.ne.s32.totalorder %s53, %s54
      %p63 = scmp.eq.s32.totalorder %s22, 0
      %p64 = por %p62, %p63
      %p65 = scmp.ne.s32.totalorder %s53, %s54
      %p66 = scmp.eq.s32.totalorder %s23, 1
      %p67 = por %p65, %p66
      %p69 = scmp.ne.s32.totalorder %s54, %s68
      %p70 = scmp.eq.s32.totalorder %s23, 0
      %p71 = por %p69, %p70
      %s73 = sadd.s32 %s72, 1
      %p76 = scmp.eq.s32.totalorder %s17, 1
      %p77 = scmp.ne.s32.totalorder %s72, %s74
      %p78 = scmp.eq.s32.totalorder %s17, 0
      %p79 = por %p77, %p78
      %p80 = scmp.ne.s32.totalorder %s72, %s74
      %p81 = scmp.eq.s32.totalorder %s22, 1
      %p82 = por %p80, %p81
      %p83 = scmp.ne.s32.totalorder %s74, %s75
      %p84 = scmp.eq.s32.totalorder %s22, 0
      %p85 = por %p83, %p84
      %p86 = scmp.ne.s32.totalorder %s74, %s75
      %p87 = scmp.eq.s32.totalorder %s23, 1
      %p88 = por %p86, %p87
      %p90 = scmp.ne.s32.totalorder %s75, %s89
      %p91 = scmp.eq.s32.totalorder %s23, 0
      %p92 = por %p90, %p91
      %s94 = sadd.s32 %s93, 1
      %p97 = scmp.eq.s32.totalorder %s17, 1
      %p98 = scmp.ne.s32.totalorder %s93, %s95
      %p99 = scmp.eq.s32.totalorder %s17, 0
      %p100 = por %p98, %p99
      %p101 = scmp.ne.s32.totalorder %s93, %s95
      %p102 = scmp.eq.s32.totalorder %s22, 1
      %p103 = por %p101, %p102
      %p104 = scmp.ne.s32.totalorder %s95, %s96
      %p105 = scmp.eq.s32.totalorder %s22, 0
      %p106 = por %p104, %p105
      %p107 = scmp.ne.s32.totalorder %s95, %s96
      %p108 = scmp.eq.s32.totalorder %s23, 1
      %p109 = por %p107, %p108
      %p111 = scmp.ne.s32.totalorder %s96, %s110
      %p112 = scmp.eq.s32.totalorder %s23, 0
      %p113 = por %p111, %p112
      %s115 = sadd.s32 %s114, 1
      %p118 = scmp.eq.s32.totalorder %s17, 1
      %p119 = scmp.ne.s32.totalorder %s114, %s116
      %p120 = scmp.eq.s32.totalorder %s17, 0
      %p121 = por %p119, %p120
      %p122 = scmp.ne.s32.totalorder %s114, %s116
      %p123 = scmp.eq.s32.totalorder %s22, 1
      %p124 = por %p122, %p123
      %p125 = scmp.ne.s32.totalorder %s116, %s117
      %p126 = scmp.eq.s32.totalorder %s22, 0
      %p127 = por %p125, %p126
      %p128 = scmp.ne.s32.totalorder %s116, %s117
      %p129 = scmp.eq.s32.totalorder %s23, 1
      %p130 = por %p128, %p129
      %p132 = scmp.ne.s32.totalorder %s117, %s131
      %p133 = scmp.eq.s32.totalorder %s23, 0
      %p134 = por %p132, %p133
      %s136 = sadd.s32 %s135, 1
      %p139 = scmp.eq.s32.totalorder %s17, 1
      %p140 = scmp.ne.s32.totalorder %s135, %s137
      %p141 = scmp.eq.s32.totalorder %s17, 0
      %p142 = por %p140, %p141
      %p143 = scmp.ne.s32.totalorder %s135, %s137
      %p144 = scmp.eq.s32.totalorder %s22, 1
      %p145 = por %p143, %p144
      %p146 = scmp.ne.s32.totalorder %s137, %s138
      %p147 = scmp.eq.s32.totalorder %s22, 0
      %p148 = por %p146, %p147
      %p149 = scmp.ne.s32.totalorder %s137, %s138
      %p150 = scmp.eq.s32.totalorder %s23, 1
      %p151 = por %p149, %p150
      %p153 = scmp.ne.s32.totalorder %s138, %s152
      %p154 = scmp.eq.s32.totalorder %s23, 0
      %p155 = por %p153, %p154
      %s157 = sadd.s32 %s156, 1
      %p160 = scmp.eq.s32.totalorder %s17, 1
      %p161 = scmp.ne.s32.totalorder %s156, %s158
      %p162 = scmp.eq.s32.totalorder %s17, 0
      %p163 = por %p161, %p162
      %p164 = scmp.ne.s32.totalorder %s156, %s158
      %p165 = scmp.eq.s32.totalorder %s22, 1
      %p166 = por %p164, %p165
      %p167 = scmp.ne.s32.totalorder %s158, %s159
      %p168 = scmp.eq.s32.totalorder %s22, 0
      %p169 = por %p167, %p168
      %p170 = scmp.ne.s32.totalorder %s158, %s159
      %p171 = scmp.eq.s32.totalorder %s23, 1
      %p172 = por %p170, %p171
      %p174 = scmp.ne.s32.totalorder %s159, %s173
      %p175 = scmp.eq.s32.totalorder %s23, 0
      %p176 = por %p174, %p175
      %s178 = sadd.s32 %s177, 1
      %p181 = scmp.eq.s32.totalorder %s17, 1
      %p182 = scmp.ne.s32.totalorder %s177, %s179
      %p183 = scmp.eq.s32.totalorder %s17, 0
      %p184 = por %p182, %p183
      %p185 = scmp.ne.s32.totalorder %s177, %s179
      %p186 = scmp.eq.s32.totalorder %s22, 1
      %p187 = por %p185, %p186
      %p188 = scmp.ne.s32.totalorder %s179, %s180
      %p189 = scmp.eq.s32.totalorder %s22, 0
      %p190 = por %p188, %p189
      %p191 = scmp.ne.s32.totalorder %s179, %s180
      %p192 = scmp.eq.s32.totalorder %s23, 1
      %p193 = por %p191, %p192
      %p195 = scmp.ne.s32.totalorder %s180, %s194
      %p196 = scmp.eq.s32.totalorder %s23, 0
      %p197 = por %p195, %p196
      %s198 = ssub.s32 %s17, %s24
      %p199 = scmp.eq.s32.totalorder %s198, 0
      %s201 = sadd.s32 %s200, 1
      %s202 = scalar_select %p199, %s200, %s201
      %p205 = pneg %p199
      %p206 = scmp.eq.s32.totalorder %s17, 1
      %p207 = por %p205, %p206
      %p208 = scmp.ne.s32.totalorder %s200, %s203
      %p209 = scmp.eq.s32.totalorder %s17, 0
      %p210 = por %p208, %p209
      %p211 = scmp.ne.s32.totalorder %s200, %s203
      %p212 = scmp.eq.s32.totalorder %s22, 1
      %p213 = por %p211, %p212
      %p214 = scmp.ne.s32.totalorder %s203, %s204
      %p215 = scmp.eq.s32.totalorder %s22, 0
      %p216 = por %p214, %p215
      %p217 = scmp.ne.s32.totalorder %s203, %s204
      %p218 = scmp.eq.s32.totalorder %s23, 1
      %p219 = por %p217, %p218
      %p221 = scmp.ne.s32.totalorder %s204, %s220
      %p222 = scmp.eq.s32.totalorder %s23, 0
      %p223 = por %p221, %p222
      %p224 = scmp.le.s32.totalorder 1, %s17
      %p225 = scmp.lt.s32.totalorder %s17, 3
      %p226 = pnand %p224, %p225
      %p227 = pneg %p226
      // Predicated region
      $region9: #{tpu_custom_call.1} parent=5 // pred_check
        _
      $region10: #{tpu_custom_call.1} parent=5 // pred_check_branch
        %229 = sbr.rel (%p226) target = $region12
      $region11: #{tpu_custom_call.1} parent=5 // pred_region
        %s230 = ssub.s32 %s17, 1
        // Predicated region
        $region13: #{tpu_custom_call.1} parent=11 // pred_check
          %p231 = pneg %p64
        $region14: #{tpu_custom_call.1} parent=11 // pred_check_branch
          %233 = sbr.rel (%p231) target = $region16
        $region15: #{tpu_custom_call.1} parent=11 // pred_region
          _
        $region16: #{tpu_custom_call.1} parent=11 // pred_fallthru
          _
        // Predicated region
        $region17: #{tpu_custom_call.1} parent=11 // pred_check
          %p234 = pneg %p85
        $region18: #{tpu_custom_call.1} parent=11 // pred_check_branch
          %236 = sbr.rel (%p234) target = $region20
        $region19: #{tpu_custom_call.1} parent=11 // pred_region
          _
        $region20: #{tpu_custom_call.1} parent=11 // pred_fallthru
          _
        // Predicated region
        $region21: #{tpu_custom_call.1} parent=11 // pred_check
          %p237 = pneg %p106
        $region22: #{tpu_custom_call.1} parent=11 // pred_check_branch
          %239 = sbr.rel (%p237) target = $region24
        $region23: #{tpu_custom_call.1} parent=11 // pred_region
          _
        $region24: #{tpu_custom_call.1} parent=11 // pred_fallthru
          _
        // Predicated region
        $region25: #{tpu_custom_call.1} parent=11 // pred_check
          %p240 = pneg %p127
        $region26: #{tpu_custom_call.1} parent=11 // pred_check_branch
          %242 = sbr.rel (%p240) target = $region28
        $region27: #{tpu_custom_call.1} parent=11 // pred_region
          _
        $region28: #{tpu_custom_call.1} parent=11 // pred_fallthru
          _
        // Predicated region
        $region29: #{tpu_custom_call.1} parent=11 // pred_check
          %p243 = pneg %p148
        $region30: #{tpu_custom_call.1} parent=11 // pred_check_branch
          %245 = sbr.rel (%p243) target = $region32
        $region31: #{tpu_custom_call.1} parent=11 // pred_region
          _
        $region32: #{tpu_custom_call.1} parent=11 // pred_fallthru
          _
        // Predicated region
        $region33: #{tpu_custom_call.1} parent=11 // pred_check
          %p246 = pneg %p169
        $region34: #{tpu_custom_call.1} parent=11 // pred_check_branch
          %248 = sbr.rel (%p246) target = $region36
        $region35: #{tpu_custom_call.1} parent=11 // pred_region
          _
        $region36: #{tpu_custom_call.1} parent=11 // pred_fallthru
          _
        // Predicated region
        $region37: #{tpu_custom_call.1} parent=11 // pred_check
          %p249 = pneg %p190
        $region38: #{tpu_custom_call.1} parent=11 // pred_check_branch
          %251 = sbr.rel (%p249) target = $region40
        $region39: #{tpu_custom_call.1} parent=11 // pred_region
          _
        $region40: #{tpu_custom_call.1} parent=11 // pred_fallthru
          _
      $region12: #{tpu_custom_call.1} parent=5 // pred_fallthru
        _
      %p252 = scmp.lt.s32.totalorder %s17, 2
      // Predicated region
      $region41: #{tpu_custom_call.1} parent=5 // pred_check
        %p253 = pneg %p252
      $region42: #{tpu_custom_call.1} parent=5 // pred_check_branch
        %255 = sbr.rel (%p253) target = $region44
      $region43: #{tpu_custom_call.1} parent=5 // pred_region
        // Predicated region
        $region45: #{tpu_custom_call.1} parent=43 // pred_check
          %p256 = pneg %p37
        $region46: #{tpu_custom_call.1} parent=43 // pred_check_branch
          %258 = sbr.rel (%p256) target = $region48
        $region47: #{tpu_custom_call.1} parent=43 // pred_region
          %p259 = scmp.lt.s32.totalorder %s17, 1
          %s260 = scalar_select %p259, %s17, 1
          %s261 = smul.addr %s260, 8
          %s262 = scalar_lea.vmem %s0, %s261
        $region48: #{tpu_custom_call.1} parent=43 // pred_fallthru
          _
      $region44: #{tpu_custom_call.1} parent=5 // pred_fallthru
        _
      %p263 = scmp.le.s32.totalorder 1, %s17
      %p264 = scmp.lt.s32.totalorder %s17, 3
      %p265 = pnand %p263, %p264
      %p266 = pneg %p265
      // Predicated region
      $region49: #{tpu_custom_call.1} parent=5 // pred_check
        _
      $region50: #{tpu_custom_call.1} parent=5 // pred_check_branch
        %268 = sbr.rel (%p265) target = $region52
      $region51: #{tpu_custom_call.1} parent=5 // pred_region
        %s269 = ssub.s32 %s17, 1
        %p270 = scmp.lt.s32.totalorder %s22, 1
        %s271 = scalar_select %p270, %s22, 1
        %s272 = smul.addr %s271, 8
        %s273 = scalar_lea.vmem %s0, %s272
        %p274 = pneg %p43
        %p275 = pneg %p40
        %p276 = pneg %p64
        %p277 = pneg %p61
        %p278 = pneg %p85
        %p279 = pneg %p82
        %p280 = pneg %p106
        %p281 = pneg %p103
        %p282 = pneg %p127
        %p283 = pneg %p124
        %p284 = pneg %p148
        %p285 = pneg %p145
        %p286 = pneg %p169
        %p287 = pneg %p166
        %p288 = pneg %p190
        %p289 = pneg %p187
        %p290 = pneg %p216
        %p291 = pneg %p213
        %s292 = sand.u32 %s203, 1
        %s293 = scalar_lea.sflag [#allocation3], %s292
        %s294 = sand.u32 %s203, 1
        %s295 = smul.addr %s294, 8
        %s296 = scalar_lea.vmem [#allocation2], %s295
        %p297 = scmp.lt.s32.totalorder %s22, 1
        %s298 = scalar_select %p297, %s22, 1
        %s299 = smul.addr %s298, 8
        %s300 = scalar_lea.vmem %s0, %s299
        %v301 = vld [vmem:[%s300] sm:$0xff]
        %v302 = vld [vmem:[%s1] sm:$0x1]
        %v303 = vld [vmem:[%s2] sm:$0x1]
        %vm304 = vcmask 261120
        %v305 = vsel %vm304, %v301, 0.0
        %306 = vadd.xlane.f32.xlu0 %v305
        %v307 = vpop.xlane.xlu0 %306
        %v308 = vmul.f32 %v301, %v301
        %v309 = vsel %vm304, %v308, 0.0
        %310 = vadd.xlane.f32.xlu0 %v309
        %v311 = vpop.xlane.xlu0 %310
        %v312 = vmul.f32 %v307, 0.03125
        %v313 = vmul.f32 %v311, 0.03125
        %v314 = vmul.f32 %v312, %v312
        %v315 = vsub.f32 %v313, %v314
        %v316 = vsub.f32 %v301, %v312
        %v317 = vadd.f32 %v315, 1e-05
        %v318 = vrsqrt.pop %v317
        %v319 = vmul.f32 %v318, %v317
        %v320 = vmul.f32 %v319, %v318
        %v321 = vmul.f32 0.5, %v320
        %v322 = vsub.f32 1.5, %v321
        %v323 = vmul.f32 %v318, %v322
        %vm324 = vweird.f32 %v317
        %vm325 = vweird.f32 %v318
        %vm326 = vmor %vm324, %vm325
        %v327 = vsel %vm326, %v318, %v323
        %v328 = vmul.f32 %v316, %v327
        %v330 = vperm.slane %v302, 0
        %v332 = vmul.f32 %v328, %v330
        %v334 = vperm.slane %v303, 0
        %v336 = vadd.f32 %v332, %v334
        %v337 = vld [vmem:[%s3] sm:$0xff]
        %v338 = vld [vmem:[%s3 + $0x8] sm:$0xff]
        %v339 = vld [vmem:[%s3 + $0x10] sm:$0xff]
        %v340 = vld [vmem:[%s3 + $0x18] sm:$0xff]
        %v341 = vld [vmem:[%s4] sm:$0x1]
        %v343 = vperm.slane %v341, 0
        %v346 = vsel %vm304, %v336, 0
        %348 = vmatpush.msra.mxu0 0.0
        %349 = vmatpush.msra.mxu0 0.0
        %350 = vmatpush.msra.mxu0 0.0
        %351 = vmatpush.msra.mxu0 0.0
        %352 = vmatpush.msra.mxu0 0.0
        %353 = vmatpush.msra.mxu0 0.0
        %354 = vmatpush.msra.mxu0 0.0
        %355 = vmatpush.msra.mxu0 0.0
        %356 = vmatpush.msra.mxu0 0.0
        %357 = vmatpush.msra.mxu0 0.0
        %358 = vmatpush.msra.mxu0 0.0
        %359 = vmatpush.msra.mxu0 0.0
        %360 = vmatpush.msra.mxu0 %v340
        %361 = vmatpush.msra.mxu0 %v339
        %362 = vmatpush.msra.mxu0 %v338
        %363 = vmatpush.msra.mxu0 %v337
        %364 = vmatmul.f32.gmra.mxu0 %v346
        %v365 = vpop.f32.mrf.mxu0
        %v366 = vadd.f32 %v343, %v365
        %367 = vdwg.mxu0
        %v368 = vld [vmem:[%s5] sm:$0x1]
        %v369 = vld [vmem:[%s6] sm:$0x1]
        %vm370 = vcmask 130048
        %v371 = vsel %vm370, %v366, 0.0
        %372 = vadd.xlane.f32.xlu0 %v371
        %v373 = vpop.xlane.xlu0 %372
        %v374 = vmul.f32 %v366, %v366
        %v375 = vsel %vm370, %v374, 0.0
        %376 = vadd.xlane.f32.xlu0 %v375
        %v377 = vpop.xlane.xlu0 %376
        %v378 = vmul.f32 %v373, 0.0625
        %v379 = vmul.f32 %v377, 0.0625
        %v380 = vmul.f32 %v378, %v378
        %v381 = vsub.f32 %v379, %v380
        %v382 = vsub.f32 %v366, %v378
        %v383 = vadd.f32 %v381, 1e-05
        %v384 = vrsqrt.pop %v383
        %v385 = vmul.f32 %v384, %v383
        %v386 = vmul.f32 %v385, %v384
        %v387 = vmul.f32 0.5, %v386
        %v388 = vsub.f32 1.5, %v387
        %v389 = vmul.f32 %v384, %v388
        %vm390 = vweird.f32 %v383
        %vm391 = vweird.f32 %v384
        %vm392 = vmor %vm390, %vm391
        %v393 = vsel %vm392, %v384, %v389
        %v394 = vmul.f32 %v382, %v393
        %v396 = vperm.slane %v368, 0
        %v398 = vmul.f32 %v394, %v396
        %v400 = vperm.slane %v369, 0
        %v402 = vadd.f32 %v398, %v400
        %v403 = vld [vmem:[%s7] sm:$0xff]
        %v404 = vld [vmem:[%s7 + $0x8] sm:$0xff]
        %v406 = vsel %vm370, %v402, 0
        %408 = vmatpush.msra.mxu0 0.0
        %409 = vmatpush.msra.mxu0 0.0
        %410 = vmatpush.msra.mxu0 0.0
        %411 = vmatpush.msra.mxu0 0.0
        %412 = vmatpush.msra.mxu0 0.0
        %413 = vmatpush.msra.mxu0 0.0
        %414 = vmatpush.msra.mxu0 0.0
        %415 = vmatpush.msra.mxu0 0.0
        %416 = vmatpush.msra.mxu0 0.0
        %417 = vmatpush.msra.mxu0 0.0
        %418 = vmatpush.msra.mxu0 0.0
        %419 = vmatpush.msra.mxu0 0.0
        %420 = vmatpush.msra.mxu0 0.0
        %421 = vmatpush.msra.mxu0 0.0
        %422 = vmatpush.msra.mxu0 %v404
        %423 = vmatpush.msra.mxu0 %v403
        %424 = vmatmul.f32.gmra.mxu0 %v406
        %v425 = vpop.f32.mrf.mxu0
        %v426 = vadd.f32 0.0, %v425
        %427 = vdwg.mxu0
        %429 = vrot.lane.b32.xlu0 %v426, 112
        %v430 = vpop.permute.xlu0 %429
        %vm431 = vcmask 64512
        %v432 = vsel %vm431, %v426, 0
        %v434 = vsel %vm431, %v430, 0
        %436 = vmatpush.xpose.msra.mxu0 0.0
        %437 = vmatpush.xpose.msra.mxu0 0.0
        %438 = vmatpush.xpose.msra.mxu0 0.0
        %439 = vmatpush.xpose.msra.mxu0 0.0
        %440 = vmatpush.xpose.msra.mxu0 0.0
        %441 = vmatpush.xpose.msra.mxu0 0.0
        %442 = vmatpush.xpose.msra.mxu0 0.0
        %443 = vmatpush.xpose.msra.mxu0 0.0
        %444 = vmatpush.xpose.msra.mxu0 0.0
        %445 = vmatpush.xpose.msra.mxu0 0.0
        %446 = vmatpush.xpose.msra.mxu0 0.0
        %447 = vmatpush.xpose.msra.mxu0 0.0
        %448 = vmatpush.xpose.msra.mxu0 0.0
        %449 = vmatpush.xpose.msra.mxu0 0.0
        %450 = vmatpush.xpose.msra.mxu0 0.0
        %451 = vmatpush.xpose.msra.mxu0 %v434
        %452 = vmatmul.f32.gmra.mxu0 %v432
        %v453 = vpop.f32.mrf.mxu0
        %v454 = vadd.f32 0.0, %v453
        %455 = vdwg.mxu0
        %v456 = vsel %vm431, %v454, -inf
        %457 = vmax.xlane.f32.xlu0 %v456
        %v458 = vpop.xlane.xlu0 %457
        %v459 = vsub.f32 %v454, %v458
        %v460 = vmul.f32 %v459, 1.442695
        %v461 = vpow.pop %v460
        %v462 = vsel %vm431, %v461, 0.0
        %463 = vadd.xlane.f32.xlu0 %v462
        %v464 = vpop.xlane.xlu0 %463
        %v465 = vrcp.pop %v464
        %v466 = vmul.f32 %v461, %v465
        %467 = vrot.lane.b32.xlu0 %v426, 96
        %v468 = vpop.permute.xlu0 %467
        %v471 = vsel %vm431, %v466, 0
        %473 = vmatpush.msra.mxu0 0.0
        %474 = vmatpush.msra.mxu0 0.0
        %475 = vmatpush.msra.mxu0 0.0
        %476 = vmatpush.msra.mxu0 0.0
        %477 = vmatpush.msra.mxu0 0.0
        %478 = vmatpush.msra.mxu0 0.0
        %479 = vmatpush.msra.mxu0 0.0
        %480 = vmatpush.msra.mxu0 0.0
        %481 = vmatpush.msra.mxu0 0.0
        %482 = vmatpush.msra.mxu0 0.0
        %483 = vmatpush.msra.mxu0 0.0
        %484 = vmatpush.msra.mxu0 0.0
        %485 = vmatpush.msra.mxu0 0.0
        %486 = vmatpush.msra.mxu0 0.0
        %487 = vmatpush.msra.mxu0 0.0
        %488 = vmatpush.msra.mxu0 %v468
        %489 = vmatmul.f32.gmra.mxu0 %v471
        %v490 = vpop.f32.mrf.mxu0
        %v491 = vadd.f32 0.0, %v490
        %492 = vdwg.mxu0
        %493 = vrot.lane.b32.xlu0 %v426, 120
        %v494 = vpop.permute.xlu0 %493
        %495 = vrot.lane.b32.xlu0 %v426, 104
        %v496 = vpop.permute.xlu0 %495
        %v497 = vsel %vm431, %v494, 0
        %v499 = vsel %vm431, %v496, 0
        %501 = vmatpush.xpose.msra.mxu0 0.0
        %502 = vmatpush.xpose.msra.mxu0 0.0
        %503 = vmatpush.xpose.msra.mxu0 0.0
        %504 = vmatpush.xpose.msra.mxu0 0.0
        %505 = vmatpush.xpose.msra.mxu0 0.0
        %506 = vmatpush.xpose.msra.mxu0 0.0
        %507 = vmatpush.xpose.msra.mxu0 0.0
        %508 = vmatpush.xpose.msra.mxu0 0.0
        %509 = vmatpush.xpose.msra.mxu0 0.0
        %510 = vmatpush.xpose.msra.mxu0 0.0
        %511 = vmatpush.xpose.msra.mxu0 0.0
        %512 = vmatpush.xpose.msra.mxu0 0.0
        %513 = vmatpush.xpose.msra.mxu0 0.0
        %514 = vmatpush.xpose.msra.mxu0 0.0
        %515 = vmatpush.xpose.msra.mxu0 0.0
        %516 = vmatpush.xpose.msra.mxu0 %v499
        %517 = vmatmul.f32.gmra.mxu0 %v497
        %v518 = vpop.f32.mrf.mxu0
        %v519 = vadd.f32 0.0, %v518
        %520 = vdwg.mxu0
        %v521 = vsel %vm431, %v519, -inf
        %522 = vmax.xlane.f32.xlu0 %v521
        %v523 = vpop.xlane.xlu0 %522
        %v524 = vsub.f32 %v519, %v523
        %v525 = vmul.f32 %v524, 1.442695
        %v526 = vpow.pop %v525
        %v527 = vsel %vm431, %v526, 0.0
        %528 = vadd.xlane.f32.xlu0 %v527
        %v529 = vpop.xlane.xlu0 %528
        %v530 = vrcp.pop %v529
        %v531 = vmul.f32 %v526, %v530
        %532 = vrot.lane.b32.xlu0 %v426, 88
        %v533 = vpop.permute.xlu0 %532
        %v536 = vsel %vm431, %v531, 0
        %538 = vmatpush.msra.mxu0 0.0
        %539 = vmatpush.msra.mxu0 0.0
        %540 = vmatpush.msra.mxu0 0.0
        %541 = vmatpush.msra.mxu0 0.0
        %542 = vmatpush.msra.mxu0 0.0
        %543 = vmatpush.msra.mxu0 0.0
        %544 = vmatpush.msra.mxu0 0.0
        %545 = vmatpush.msra.mxu0 0.0
        %546 = vmatpush.msra.mxu0 0.0
        %547 = vmatpush.msra.mxu0 0.0
        %548 = vmatpush.msra.mxu0 0.0
        %549 = vmatpush.msra.mxu0 0.0
        %550 = vmatpush.msra.mxu0 0.0
        %551 = vmatpush.msra.mxu0 0.0
        %552 = vmatpush.msra.mxu0 0.0
        %553 = vmatpush.msra.mxu0 %v533
        %554 = vmatmul.f32.gmra.mxu0 %v536
        %v555 = vpop.f32.mrf.mxu0
        %v556 = vadd.f32 0.0, %v555
        %557 = vdwg.mxu0
        %559 = vrot.lane.b32.xlu0 %v556, 8
        %v560 = vpop.permute.xlu0 %559
        %v562 = vsel %vm431, %v491, %v560
        %v563 = vadd.f32 %v366, %v562
        %564 = vst.msk [vmem:[%s296] sm:$0xff] %vm370, %v563
        %s565 = sand.u32 %s203, 1
        %s566 = scalar_lea.sflag [#allocation3], %s565
        %s567 = sand.u32 %s203, 1
        %s568 = smul.addr %s567, 8
        %s569 = scalar_lea.vmem [#allocation2], %s568
        // Predicated region
        $region53: #{tpu_custom_call.1} parent=51 // pred_check
          %p570 = pneg %p213
        $region54: #{tpu_custom_call.1} parent=51 // pred_check_branch
          %572 = sbr.rel (%p570) target = $region56
        $region55: #{tpu_custom_call.1} parent=51 // pred_region
          %574 = vsyncadd %s566, 0
          %s575 = smul.addr %s22, 8
          %s576 = scalar_lea.hbm %s8, %s575
          %s578 = sshll.u32 %s569, 4
          %s579 = int_to_ptr.vmem [resolvable:$true] %s578
          %s580 = sshll.u32 %s576, 4
          %s581 = int_to_ptr.hbm [resolvable:$true] %s580
          %583 = dma.vmem_to_hbm [thread:$0]  %s579, 128, %s581, %s566
        $region56: #{tpu_custom_call.1} parent=51 // pred_fallthru
          _
      $region52: #{tpu_custom_call.1} parent=5 // pred_fallthru
        _
      %p584 = scmp.le.s32.totalorder 2, %s17
      // Predicated region
      $region57: #{tpu_custom_call.1} parent=5 // pred_check
        %p585 = pneg %p584
      $region58: #{tpu_custom_call.1} parent=5 // pred_check_branch
        %587 = sbr.rel (%p585) target = $region60
      $region59: #{tpu_custom_call.1} parent=5 // pred_region
        %s588 = ssub.s32 %s17, 2
        // Predicated region
        $region61: #{tpu_custom_call.1} parent=59 // pred_check
          %p589 = pneg %p219
        $region62: #{tpu_custom_call.1} parent=59 // pred_check_branch
          %591 = sbr.rel (%p589) target = $region64
        $region63: #{tpu_custom_call.1} parent=59 // pred_region
          %s592 = sand.u32 %s204, 1
          %s593 = scalar_lea.sflag [#allocation3], %s592
          %s594 = sand.u32 %s204, 1
          %s595 = smul.addr %s594, 8
          %s596 = scalar_lea.vmem [#allocation2], %s595
          %598 = dma.done %s593, 128
        $region64: #{tpu_custom_call.1} parent=59 // pred_fallthru
          _
      $region60: #{tpu_custom_call.1} parent=5 // pred_fallthru
        _
    $region6: #{tpu_custom_call.1} parent=1 // loop_footer
      %s21 = sadd.s32 1, %s17
    $region7: #{tpu_custom_call.1} parent=1 // loop_footer_branch
      %16 = sbr.rel target = $region3
    $region8: #{tpu_custom_call.1} parent=1 // loop_exit
      _
    %599 = vsyncpa [#allocation3], 1
    %s600 = scalar_lea.sflag [#allocation3], 1
    %601 = vsyncpa %s600, 1

</llo_original>
